<compile_context>
chip_gen: v5e
topology: v5e:2x2
jax: 0.10.0
libtpu: 0.0.40
codegen_flags: <defaults>
</compile_context>

<pallas_src>
import jax
import jax.numpy as jnp
from jax import lax
from jax.experimental import pallas as pl
from jax.experimental.pallas import tpu as pltpu


def _round_up(x, m):
    return ((x + m - 1) // m) * m


def _embedbag_fc_kernel(tok_ref,        # (T_pad,) int32, SMEM (scalar prefetch)
                        starts_ref,     # (B_pad, 1) int32
                        ends_ref,       # (B_pad, 1) int32
                        emb_hbm,        # (V_pad, E_pad) f32, HBM (pl.ANY)
                        w_ref,          # (E_pad, C_pad) f32 (resident)
                        b_ref,          # (1, C_pad) f32 (resident)
                        out_ref,        # (B_pad, C_pad) f32
                        gath_ref,       # VMEM (T_TILE, E_pad) f32 scratch
                        sem,            # DMA semaphore
                        acc_ref):       # VMEM (B_pad, E_pad) f32 accumulator
    t = pl.program_id(0)
    nt = pl.num_programs(0)
    T_TILE = gath_ref.shape[0]
    B_pad = acc_ref.shape[0]
    base = t * T_TILE

    # ---- once: zero the bag-sum accumulator --------------------------------
    @pl.when(t == 0)
    def _():
        acc_ref[...] = jnp.zeros_like(acc_ref)

    # ---- gather this tile's embedding rows: one small row-DMA per token ----
    # (start all, then wait all, so the row fetches overlap each other)
    @pl.loop(0, T_TILE)
    def _(r):
        tok = tok_ref[base + r]
        pltpu.make_async_copy(emb_hbm.at[pl.ds(tok, 1), :],
                              gath_ref.at[pl.ds(r, 1), :],
                              sem).start()

    @pl.loop(0, T_TILE)
    def _(r):
        pltpu.make_async_copy(emb_hbm.at[pl.ds(0, 1), :],
                              gath_ref.at[pl.ds(r, 1), :],
                              sem).wait()

    # ---- per-tile bag membership matrix, MXU does the bag summation --------
    t_idx = lax.broadcasted_iota(jnp.int32, (B_pad, T_TILE), 1) + base
    in_bag = (t_idx >= starts_ref[...]) & (t_idx < ends_ref[...])
    a = in_bag.astype(jnp.float32)                              # {0,1}, exact
    acc_ref[...] += jnp.dot(a, gath_ref[...],
                            preferred_element_type=jnp.float32)  # (B_pad, E_pad)

    # ---- last token tile: exact mean, FC + bias, lane-dense store ----------
    @pl.when(t == nt - 1)
    def _():
        n = (ends_ref[...] - starts_ref[...]).astype(jnp.float32)   # (B_pad, 1)
        mean = acc_ref[...] / jnp.maximum(n, 1.0)                   # empty bag -> 0 row
        logits = jnp.dot(mean, w_ref[...],
                         preferred_element_type=jnp.float32) + b_ref[...]
        out_ref[...] = logits.astype(out_ref.dtype)


def text_classification_forward(text, offsets, emb_table, fc_w, fc_b):
    """text: (T,) int token ids, offsets: (B,) bag start indices (like nn.EmbeddingBag)."""
    T = int(text.shape[0])
    B = int(offsets.shape[0])
    vocab, embed_dim = emb_table.shape
    num_class = fc_w.shape[0]

    # --- tiling parameters ---------------------------------------------------
    T_TILE = min(128, _round_up(max(T, 1), 8))     # tokens gathered per grid step
    T_pad = _round_up(max(T, 1), T_TILE)
    B_pad = _round_up(B, 8)
    E_pad = _round_up(embed_dim, 128)
    C_pad = _round_up(num_class, 128)
    V_pad = _round_up(vocab, 8)

    # --- wrapper-side glue (plain JAX, zero padding) --------------------------
    offsets_i = offsets.astype(jnp.int32)
    ends_i = jnp.concatenate([offsets_i[1:], jnp.array([T], jnp.int32)])
    # padded bag rows get start == end == T -> empty bag -> zero embedding row.
    starts_p = jnp.full((B_pad,), T, jnp.int32).at[:B].set(offsets_i).reshape(B_pad, 1)
    ends_p = jnp.full((B_pad,), T, jnp.int32).at[:B].set(ends_i).reshape(B_pad, 1)

    # token ids live in SMEM via scalar prefetch (no (T,1) VMEM block).
    tok_p = jnp.zeros((T_pad,), jnp.int32).at[:T].set(text.astype(jnp.int32))

    emb_p = jnp.zeros((V_pad, E_pad), jnp.float32).at[:vocab, :embed_dim].set(
        emb_table.astype(jnp.float32))
    w_t = jnp.zeros((E_pad, C_pad), jnp.float32).at[:embed_dim, :num_class].set(
        fc_w.T.astype(jnp.float32))
    bias_p = jnp.zeros((1, C_pad), jnp.float32).at[0, :num_class].set(
        fc_b.astype(jnp.float32))

    grid = (T_pad // T_TILE,)

    out = pl.pallas_call(
        _embedbag_fc_kernel,
        out_shape=jax.ShapeDtypeStruct((B_pad, C_pad), jnp.float32),
        grid_spec=pltpu.PrefetchScalarGridSpec(
            num_scalar_prefetch=1,
            grid=grid,
            in_specs=[
                pl.BlockSpec((B_pad, 1), lambda t, tok: (0, 0)),       # bag starts
                pl.BlockSpec((B_pad, 1), lambda t, tok: (0, 0)),       # bag ends
                pl.BlockSpec(memory_space=pl.ANY),                     # emb table in HBM
                pl.BlockSpec((E_pad, C_pad), lambda t, tok: (0, 0)),   # W^T (resident)
                pl.BlockSpec((1, C_pad), lambda t, tok: (0, 0)),       # bias (resident)
            ],
            out_specs=pl.BlockSpec((B_pad, C_pad), lambda t, tok: (0, 0)),
            scratch_shapes=[
                pltpu.VMEM((T_TILE, E_pad), jnp.float32),              # gathered rows
                pltpu.SemaphoreType.DMA,                               # gather DMA sem
                pltpu.VMEM((B_pad, E_pad), jnp.float32),               # bag-sum accumulator
            ]),
        compiler_params=pltpu.CompilerParams(
            dimension_semantics=("arbitrary",),
            vmem_limit_bytes=32 * 1024 * 1024),
    )(tok_p, starts_p, ends_p, emb_p, w_t, bias_p)

    return out[:B, :num_class]


def _reference_forward(text, offsets, emb_table, fc_w, fc_b):
    T = text.shape[0]
    B = offsets.shape[0]
    ends = jnp.concatenate([offsets[1:], jnp.array([T], dtype=offsets.dtype)])
    outs = []
    for b in range(B):
        idx = text[offsets[b]:ends[b]]
        bag = emb_table[idx].mean(axis=0) if idx.shape[0] > 0 else jnp.zeros(
            emb_table.shape[1], jnp.float32)
        outs.append(bag)
    embedded = jnp.stack(outs)
    return jnp.einsum('be,ce->bc', embedded, fc_w,
                      precision=jax.lax.Precision.HIGHEST) + fc_b


if __name__ == "__main__":
    vocab_size, embed_dim, num_class = 50, 32, 4
    key = jax.random.PRNGKey(0)
    k_emb, k_w, k_txt = jax.random.split(key, 3)

    # Deterministic init mirroring init_weights (uniform(-0.5, 0.5), zero bias).
    initrange = 0.5
    emb_table = jax.random.uniform(k_emb, (vocab_size, embed_dim),
                                   minval=-initrange, maxval=initrange,
                                   dtype=jnp.float32)
    fc_w = jax.random.uniform(k_w, (num_class, embed_dim),
                              minval=-initrange, maxval=initrange,
                              dtype=jnp.float32)
    fc_b = jnp.zeros((num_class,), jnp.float32)

    # Small example: 2 bags over a flat sequence of 8 tokens.
    text = jax.random.randint(k_txt, (8,), 0, vocab_size, dtype=jnp.int32)
    offsets = jnp.array([0, 5], dtype=jnp.int32)   # bag0: tokens[0:5], bag1: tokens[5:8]

    out = text_classification_forward(text, offsets, emb_table, fc_w, fc_b)
    out = jax.block_until_ready(out)

    ref = _reference_forward(text, offsets, emb_table, fc_w, fc_b)
    assert out.shape == (offsets.shape[0], num_class)
    # Exact f32 path (no approx reciprocal) -> tight tolerance restored.
    assert jnp.allclose(out, ref, atol=1e-5, rtol=1e-4), (out, ref)

    print("KERNEL_OK")
</pallas_src>

<mosaic_0001>
module attributes {stable_mosaic.version = 11 : i64} {
  func.func @_embedbag_fc_kernel(%arg0: i32, %arg1: memref<8xi32, #tpu.memory_space<smem>>, %arg2: memref<8x1xi32, #tpu.memory_space<vmem>>, %arg3: memref<8x1xi32, #tpu.memory_space<vmem>>, %arg4: memref<56x128xf32, #tpu.memory_space<any>>, %arg5: memref<128x128xf32, #tpu.memory_space<vmem>>, %arg6: memref<1x128xf32, #tpu.memory_space<vmem>>, %arg7: memref<8x128xf32, #tpu.memory_space<vmem>>, %arg8: memref<8x128xf32, #tpu.memory_space<vmem>>, %arg9: memref<!tpu.dma_semaphore, #tpu.memory_space<semaphore_mem>>, %arg10: memref<8x128xf32, #tpu.memory_space<vmem>>) attributes {dimension_semantics = [#tpu.dimension_semantics<arbitrary>], iteration_bounds = array<i64: 1>, scalar_prefetch = 1 : i64, scratch_operands = 3 : i64, tpu.core_type = #tpu.core_type<tc>, window_params = [{pipeline_mode = #tpu.pipeline_mode<synchronous>, transform_indices = @transform_0, window_bounds = array<i64: 8, 1>}, {pipeline_mode = #tpu.pipeline_mode<synchronous>, transform_indices = @transform_1, window_bounds = array<i64: 8, 1>}, {}, {pipeline_mode = #tpu.pipeline_mode<synchronous>, transform_indices = @transform_3, window_bounds = array<i64: 128, 128>}, {pipeline_mode = #tpu.pipeline_mode<synchronous>, transform_indices = @transform_4, window_bounds = array<i64: 1, 128>}, {pipeline_mode = #tpu.pipeline_mode<synchronous>, transform_indices = @transform_5, window_bounds = array<i64: 8, 128>}]} {
    %c8_i32 = arith.constant 8 : i32
    %0 = arith.muli %arg0, %c8_i32 : i32
    %c0_i32 = arith.constant 0 : i32
    %1 = arith.cmpi eq, %arg0, %c0_i32 : i32
    %2 = arith.extui %1 : i1 to i32
    %c0_i32_0 = arith.constant 0 : i32
    %3 = arith.cmpi ne, %2, %c0_i32_0 : i32
    scf.if %3 {
      %cst_19 = arith.constant 0.000000e+00 : f32
      %26 = vector.broadcast %cst_19 : f32 to vector<8x128xf32>
      %c0_20 = arith.constant 0 : index
      %c0_21 = arith.constant 0 : index
      %27 = vector.load %arg10[%c0_20, %c0_21] : memref<8x128xf32, #tpu.memory_space<vmem>>, vector<8x128xf32>
      tpu.vector_store %arg10[%c0_20, %c0_21], %26 {strides = array<i32>} : memref<8x128xf32, #tpu.memory_space<vmem>>, vector<8x128xf32>,
    } else {
    }
    %c0_i32_1 = arith.constant 0 : i32
    %c8_i32_2 = arith.constant 8 : i32
    %4 = arith.addi %c0_i32_1, %c8_i32_2 : i32
    %c1_i32 = arith.constant 1 : i32
    scf.for %arg11 = %c0_i32_1 to %4 step %c1_i32  : i32 {
      %c1_i32_19 = arith.constant 1 : i32
      %26 = arith.muli %arg11, %c1_i32_19 : i32
      %c0_i32_20 = arith.constant 0 : i32
      %27 = arith.addi %c0_i32_20, %26 : i32
      %28 = arith.addi %0, %27 : i32
      %29 = arith.index_cast %28 : i32 to index
      %30 = memref.load %arg1[%29] : memref<8xi32, #tpu.memory_space<smem>>
      %c0_i32_21 = arith.constant 0 : i32
      %31 = tpu.memref_slice %arg4[%30, %c0_i32_21] : memref<56x128xf32, #tpu.memory_space<any>> -> memref<1x128xf32, #tpu.memory_space<any>>
      %c0_i32_22 = arith.constant 0 : i32
      %32 = tpu.memref_slice %arg8[%27, %c0_i32_22] : memref<8x128xf32, #tpu.memory_space<vmem>> -> memref<1x128xf32, #tpu.memory_space<vmem>>
      tpu.enqueue_dma source(%31 : memref<1x128xf32, #tpu.memory_space<any>>) target(%32 : memref<1x128xf32, #tpu.memory_space<vmem>>) target_semaphore(%arg9 : memref<!tpu.dma_semaphore, #tpu.memory_space<semaphore_mem>>)
    }
    %c8_i32_3 = arith.constant 8 : i32
    %c0_i32_4 = arith.constant 0 : i32
    %c8_i32_5 = arith.constant 8 : i32
    %5 = arith.addi %c0_i32_4, %c8_i32_5 : i32
    %c1_i32_6 = arith.constant 1 : i32
    scf.for %arg11 = %c0_i32_4 to %5 step %c1_i32_6  : i32 {
      %c1_i32_19 = arith.constant 1 : i32
      %26 = arith.muli %arg11, %c1_i32_19 : i32
      %c0_i32_20 = arith.constant 0 : i32
      %27 = arith.addi %c0_i32_20, %26 : i32
      %c0_i32_21 = arith.constant 0 : i32
      %c0_i32_22 = arith.constant 0 : i32
      %28 = tpu.memref_slice %arg4[%c0_i32_21, %c0_i32_22] : memref<56x128xf32, #tpu.memory_space<any>> -> memref<1x128xf32, #tpu.memory_space<any>>
      %c0_i32_23 = arith.constant 0 : i32
      %29 = tpu.memref_slice %arg8[%27, %c0_i32_23] : memref<8x128xf32, #tpu.memory_space<vmem>> -> memref<1x128xf32, #tpu.memory_space<vmem>>
      tpu.wait_dma2 semaphore(%arg9 : memref<!tpu.dma_semaphore, #tpu.memory_space<semaphore_mem>>) src(%28 : memref<1x128xf32, #tpu.memory_space<any>>) dst(%29 : memref<1x128xf32, #tpu.memory_space<vmem>>)
    }
    %c8_i32_7 = arith.constant 8 : i32
    %6 = tpu.iota {dimensions = array<i32: 1>} : vector<8x8xi32>
    %7 = vector.broadcast %0 : i32 to vector<8x8xi32>
    %8 = arith.addi %6, %7 : vector<8x8xi32>
    %c0 = arith.constant 0 : index
    %c0_8 = arith.constant 0 : index
    %9 = vector.load %arg2[%c0, %c0_8] : memref<8x1xi32, #tpu.memory_space<vmem>>, vector<8x1xi32>
    %10 = vector.broadcast %9 : vector<8x1xi32> to vector<8x8xi32>
    %11 = arith.cmpi sge, %8, %10 : vector<8x8xi32>
    %c0_9 = arith.constant 0 : index
    %c0_10 = arith.constant 0 : index
    %12 = vector.load %arg3[%c0_9, %c0_10] : memref<8x1xi32, #tpu.memory_space<vmem>>, vector<8x1xi32>
    %13 = vector.broadcast %12 : vector<8x1xi32> to vector<8x8xi32>
    %14 = arith.cmpi slt, %8, %13 : vector<8x8xi32>
    %15 = arith.andi %11, %14 : vector<8x8xi1>
    %16 = arith.extui %15 : vector<8x8xi1> to vector<8x8xi32>
    %17 = arith.sitofp %16 : vector<8x8xi32> to vector<8x8xf32>
    %c0_11 = arith.constant 0 : index
    %c0_12 = arith.constant 0 : index
    %18 = vector.load %arg10[%c0_11, %c0_12] : memref<8x128xf32, #tpu.memory_space<vmem>>, vector<8x128xf32>
    %c0_13 = arith.constant 0 : index
    %c0_14 = arith.constant 0 : index
    %19 = vector.load %arg8[%c0_13, %c0_14] : memref<8x128xf32, #tpu.memory_space<vmem>>, vector<8x128xf32>
    %cst = arith.constant dense<0.000000e+00> : vector<8x128xf32>
    %20 = tpu.matmul %17, %19, %cst {dimension_numbers = #tpu.dot_dimension_numbers<[1], [0], [0], [1], [0, 0, 1, 1], [], []>} : vector<8x8xf32>, vector<8x128xf32>, vector<8x128xf32> -> vector<8x128xf32>
    %21 = arith.addf %18, %20 : vector<8x128xf32>
    %c0_15 = arith.constant 0 : index
    %c0_16 = arith.constant 0 : index
    %22 = vector.load %arg10[%c0_15, %c0_16] : memref<8x128xf32, #tpu.memory_space<vmem>>, vector<8x128xf32>
    tpu.vector_store %arg10[%c0_15, %c0_16], %21 {strides = array<i32>} : memref<8x128xf32, #tpu.memory_space<vmem>>, vector<8x128xf32>,
    %c0_i32_17 = arith.constant 0 : i32
    %23 = arith.cmpi eq, %arg0, %c0_i32_17 : i32
    %24 = arith.extui %23 : i1 to i32
    %c0_i32_18 = arith.constant 0 : i32
    %25 = arith.cmpi ne, %24, %c0_i32_18 : i32
    scf.if %25 {
      %c0_19 = arith.constant 0 : index
      %c0_20 = arith.constant 0 : index
      %26 = vector.load %arg3[%c0_19, %c0_20] : memref<8x1xi32, #tpu.memory_space<vmem>>, vector<8x1xi32>
      %c0_21 = arith.constant 0 : index
      %c0_22 = arith.constant 0 : index
      %27 = vector.load %arg2[%c0_21, %c0_22] : memref<8x1xi32, #tpu.memory_space<vmem>>, vector<8x1xi32>
      %28 = arith.subi %26, %27 : vector<8x1xi32>
      %29 = arith.sitofp %28 : vector<8x1xi32> to vector<8x1xf32>
      %c0_23 = arith.constant 0 : index
      %c0_24 = arith.constant 0 : index
      %30 = vector.load %arg10[%c0_23, %c0_24] : memref<8x128xf32, #tpu.memory_space<vmem>>, vector<8x128xf32>
      %cst_25 = arith.constant 1.000000e+00 : f32
      %31 = vector.broadcast %cst_25 : f32 to vector<8x1xf32>
      %32 = arith.maximumf %29, %31 : vector<8x1xf32>
      %33 = vector.broadcast %32 : vector<8x1xf32> to vector<8x128xf32>
      %34 = arith.divf %30, %33 : vector<8x128xf32>
      %c0_26 = arith.constant 0 : index
      %c0_27 = arith.constant 0 : index
      %35 = vector.load %arg5[%c0_26, %c0_27] : memref<128x128xf32, #tpu.memory_space<vmem>>, vector<128x128xf32>
      %cst_28 = arith.constant dense<0.000000e+00> : vector<8x128xf32>
      %36 = tpu.matmul %34, %35, %cst_28 {dimension_numbers = #tpu.dot_dimension_numbers<[1], [0], [0], [1], [0, 0, 1, 1], [], []>} : vector<8x128xf32>, vector<128x128xf32>, vector<8x128xf32> -> vector<8x128xf32>
      %c0_29 = arith.constant 0 : index
      %c0_30 = arith.constant 0 : index
      %37 = vector.load %arg6[%c0_29, %c0_30] : memref<1x128xf32, #tpu.memory_space<vmem>>, vector<1x128xf32>
      %38 = vector.broadcast %37 : vector<1x128xf32> to vector<8x128xf32>
      %39 = arith.addf %36, %38 : vector<8x128xf32>
      %c0_31 = arith.constant 0 : index
      %c0_32 = arith.constant 0 : index
      %40 = vector.load %arg7[%c0_31, %c0_32] : memref<8x128xf32, #tpu.memory_space<vmem>>, vector<8x128xf32>
      tpu.vector_store %arg7[%c0_31, %c0_32], %39 {strides = array<i32>} : memref<8x128xf32, #tpu.memory_space<vmem>>, vector<8x128xf32>,
    } else {
    }
    return
  }
  func.func @transform_0(%arg0: i32, %arg1: memref<8xi32, #tpu.memory_space<smem>>) -> (i32, i32) {
    %c0_i32 = arith.constant 0 : i32
    %c0_i32_0 = arith.constant 0 : i32
    %c0_i32_1 = arith.constant 0 : i32
    return %c0_i32, %c0_i32_0 : i32, i32
  }
  func.func @transform_1(%arg0: i32, %arg1: memref<8xi32, #tpu.memory_space<smem>>) -> (i32, i32) {
    %c0_i32 = arith.constant 0 : i32
    %c0_i32_0 = arith.constant 0 : i32
    %c0_i32_1 = arith.constant 0 : i32
    return %c0_i32, %c0_i32_0 : i32, i32
  }
  func.func @transform_3(%arg0: i32, %arg1: memref<8xi32, #tpu.memory_space<smem>>) -> (i32, i32) {
    %c0_i32 = arith.constant 0 : i32
    %c0_i32_0 = arith.constant 0 : i32
    %c0_i32_1 = arith.constant 0 : i32
    return %c0_i32, %c0_i32_0 : i32, i32
  }
  func.func @transform_4(%arg0: i32, %arg1: memref<8xi32, #tpu.memory_space<smem>>) -> (i32, i32) {
    %c0_i32 = arith.constant 0 : i32
    %c0_i32_0 = arith.constant 0 : i32
    %c0_i32_1 = arith.constant 0 : i32
    return %c0_i32, %c0_i32_0 : i32, i32
  }
  func.func @transform_5(%arg0: i32, %arg1: memref<8xi32, #tpu.memory_space<smem>>) -> (i32, i32) {
    %c0_i32 = arith.constant 0 : i32
    %c0_i32_0 = arith.constant 0 : i32
    %c0_i32_1 = arith.constant 0 : i32
    return %c0_i32, %c0_i32_0 : i32, i32
  }
}

</mosaic_0001>

<llo_original>
// kernel: tpu_custom_call.1
$region0: #{tpu_custom_call.1}
  #allocation0 [shape = 'u32[]', space=smem, size = 0x4, offset = 0x4, fixed_abs, tag = 'smem constant byte address 0x4 - core index']
  #allocation1 [shape = 'u32[72,128]{1,0:T(1,128)}', space=vmem, size = 0x9000, scoped, tag = 'internal scratch']
  #allocation2 [shape = 'f32[8,128]{1,0:T(8,128)}', space=vmem, size = 0x1000, scoped, tag = 'scratch operand']
  #allocation3 [shape = 's32[1]{0}', space=sflag, size = 0x4, scoped, tag = 'scratch operand']
  #allocation4 [shape = 'f32[8,128]{1,0:T(8,128)}', space=vmem, size = 0x1000, scoped, tag = 'scratch operand']
  #allocation5 [shape = 's32[1]{0}', space=sflag, size = 0x4, scoped, tag = 'scoped memory for tpu_custom_call.1']
  #allocation6 [shape = 'u8[512]{0}', space=smem, size = 0x200, scoped, tag = 'prefetched SMEM operand 0']
  #allocation11 [shape = 's32[]', space=sflag, size = 0x4, offset = 0, fixed_abs, tag = 'sflag constant byte address 0x0 - dummy sync flag']
  #allocation12 [shape = 's32[]', space=sflag, size = 0x4, offset = 0, fixed_abs, tag = 'sflag constant byte address 0x0 - dummy sync flag']
  #allocation13 [shape = 'u32[]', space=smem, size = 0x4, offset = 0x44, fixed_abs, tag = 'smem constant byte address 0x44 - assertion arg 0']
  #allocation14 [shape = 'u32[]', space=smem, size = 0x4, offset = 0x48, fixed_abs, tag = 'smem constant byte address 0x48 - assertion arg 1']
  %s0 = inlined_call_operand.vmem [shape: s32[8], index: 0, kind: input, shape index: {}]
  %s1 = inlined_call_operand.vmem [shape: s32[8,1], index: 1, kind: input, shape index: {}]
  %s2 = inlined_call_operand.vmem [shape: s32[8,1], index: 2, kind: input, shape index: {}]
  %s3 = inlined_call_operand.hbm [shape: f32[56,128], index: 3, kind: input, shape index: {}]
  %s4 = inlined_call_operand.hbm [shape: f32[128,128], index: 4, kind: input, shape index: {}]
  %s5 = inlined_call_operand.vmem [shape: f32[1,128], index: 5, kind: input, shape index: {}]
  %s6 = inlined_call_operand.hbm [shape: f32[8,128], index: 6, kind: output, shape index: {}]
  %s7 = sld [smem:[#allocation0]]
  $region56: #{tpu_custom_call.1} parent=0
    _
  %s9 = ssub.s32 1, %s7
  %s10 = scalar_select 0, %s9, %s7
  %s12 = sshll.u32 %s0, 4
  %s13 = int_to_ptr.vmem [resolvable:$true] %s12
  %15 = dma.vmem_to_smem %s13, 16, [#allocation6], [#allocation5]
  %17 = dma.done [#allocation5], 16
  %18 = sfence
  $region1: #{tpu_custom_call.1} parent=0
    #allocation7 [shape = 'u8[65536]{0}', space=vmem, size = 0x10000, scoped, tag = 'input window, operand 4, single buffered']
    #allocation8 [shape = 's32[1]{0}', space=sflag, size = 0x4, scoped, tag = 'scoped memory for tpu_custom_call.1']
    #allocation9 [shape = 's32[1]{0}', space=sflag, size = 0x4, scoped, tag = 'scoped memory for tpu_custom_call.1']
    #allocation10 [shape = 'u8[4096]{0}', space=vmem, size = 0x1000, scoped, tag = 'output window, operand 0, single buffered']
    %19 = vsyncpa [#allocation8], 0
    %20 = vsyncpa [#allocation9], 0
    // Predicated region
    $region2: #{tpu_custom_call.1} parent=1 // pred_check
      _
    $region3: #{tpu_custom_call.1} parent=1 // pred_check_branch
      %22 = sbr.rel (0) target = $region5
    $region4: #{tpu_custom_call.1} parent=1 // pred_region
      _
    $region5: #{tpu_custom_call.1} parent=1 // pred_fallthru
      _
    // Predicated region
    $region6: #{tpu_custom_call.1} parent=1 // pred_check
      _
    $region7: #{tpu_custom_call.1} parent=1 // pred_check_branch
      %24 = sbr.rel (0) target = $region9
    $region8: #{tpu_custom_call.1} parent=1 // pred_region
      _
    $region9: #{tpu_custom_call.1} parent=1 // pred_fallthru
      _
    // Predicated region
    $region10: #{tpu_custom_call.1} parent=1 // pred_check
      _
    $region11: #{tpu_custom_call.1} parent=1 // pred_check_branch
      %26 = sbr.rel (0) target = $region13
    $region12: #{tpu_custom_call.1} parent=1 // pred_region
      %28 = vsyncadd [#allocation8], 0
      %s29 = sshll.u32 %s4, 4
      %s30 = int_to_ptr.hbm [resolvable:$true] %s29
      %s31 = sshll.u32 [#allocation7], 4
      %s32 = int_to_ptr.vmem [resolvable:$true] %s31
      %37 = dma.hbm_to_vmem [thread:$0]  %s30, 2048, %s32, [#allocation8], 128, 128, 8
    $region13: #{tpu_custom_call.1} parent=1 // pred_fallthru
      _
    // Predicated region
    $region14: #{tpu_custom_call.1} parent=1 // pred_check
      _
    $region15: #{tpu_custom_call.1} parent=1 // pred_check_branch
      %39 = sbr.rel (0) target = $region17
    $region16: #{tpu_custom_call.1} parent=1 // pred_region
      _
    $region17: #{tpu_custom_call.1} parent=1 // pred_fallthru
      _
    // Predicated region
    $region18: #{tpu_custom_call.1} parent=1 // pred_check
      _
    $region19: #{tpu_custom_call.1} parent=1 // pred_check_branch
      %41 = sbr.rel (0) target = $region21
    $region20: #{tpu_custom_call.1} parent=1 // pred_region
      %43 = dma.done [#allocation8], 2048
    $region21: #{tpu_custom_call.1} parent=1 // pred_fallthru
      _
    %s44 = smul.u32 0, 8
    %p45 = scmp.eq.s32.totalorder 0, 0
    // Predicated region
    $region22: #{tpu_custom_call.1} parent=1 // pred_check
      %p46 = pneg %p45
    $region23: #{tpu_custom_call.1} parent=1 // pred_check_branch
      %48 = sbr.rel (%p46) target = $region25
    $region24: #{tpu_custom_call.1} parent=1 // pred_region
      %49 = vst [vmem:[#allocation4] sm:$0xff] 0.0
    $region25: #{tpu_custom_call.1} parent=1 // pred_fallthru
      _
    loop: start=0, step=1, limit=8
    $region26: #{tpu_custom_call.1} parent=1 // loop_pre_header
      _
    $region27: #{tpu_custom_call.1} parent=1 // loop_header
      %s51 = sphi 0, %s55
      %p52 = scmp.ge.s32.totalorder %s51, 8
    $region28: #{tpu_custom_call.1} parent=1 // loop_header_branch
      %54 = sbr.rel (%p52) target = $region32
    $region29: #{tpu_custom_call.1} parent=1 // loop_body
      %s56 = sadd.s32 %s44, %s51
      %s57 = sld [smem:[#allocation6 + %s56]]
      %s58 = scalar_lea.hbm %s3, %s57
      %s59 = scalar_lea.vmem [#allocation2], %s51
      // Predicated region
      $region33: #{tpu_custom_call.1} parent=29 // pred_check
        _
      $region34: #{tpu_custom_call.1} parent=29 // pred_check_branch
        %61 = sbr.rel target = $region36
      $region35: #{tpu_custom_call.1} parent=29 // pred_region
        %62 = sst [smem:[#allocation13]] [#allocation12]
        %63 = sst [smem:[#allocation14]] [#allocation11]
      $region36: #{tpu_custom_call.1} parent=29 // pred_fallthru
        _
      %65 = shalt.err (0)
      %s67 = sshll.u32 %s58, 4
      %s68 = int_to_ptr.hbm [resolvable:$true] %s67
      %s69 = sshll.u32 %s59, 4
      %s70 = int_to_ptr.vmem [resolvable:$true] %s69
      %72 = dma.hbm_to_vmem [thread:$0]  %s68, 16, %s70, [#allocation3]
    $region30: #{tpu_custom_call.1} parent=1 // loop_footer
      %s55 = sadd.s32 1, %s51
    $region31: #{tpu_custom_call.1} parent=1 // loop_footer_branch
      %50 = sbr.rel target = $region27
    $region32: #{tpu_custom_call.1} parent=1 // loop_exit
      _
    loop: start=0, step=1, limit=8
    $region37: #{tpu_custom_call.1} parent=1 // loop_pre_header
      _
    $region38: #{tpu_custom_call.1} parent=1 // loop_header
      %s74 = sphi 0, %s78
      %p75 = scmp.ge.s32.totalorder %s74, 8
    $region39: #{tpu_custom_call.1} parent=1 // loop_header_branch
      %77 = sbr.rel (%p75) target = $region43
    $region40: #{tpu_custom_call.1} parent=1 // loop_body
      %s79 = smul.u32 1, 1
      %s80 = sshll.u32 %s79, 4
      %81 = dma.done [#allocation3], %s80
    $region41: #{tpu_custom_call.1} parent=1 // loop_footer
      %s78 = sadd.s32 1, %s74
    $region42: #{tpu_custom_call.1} parent=1 // loop_footer_branch
      %73 = sbr.rel target = $region38
    $region43: #{tpu_custom_call.1} parent=1 // loop_exit
      _
    %v82 = vlaneseq
    %v83 = vand.u32 %v82, 127
    %v84 = vstv %s44
    %v85 = vadd.s32 %v83, %v84
    %v86 = vld [vmem:[%s1] sm:$0xff]
    %87 = vset.pattern.permute.xlu0 0
    %88 = vperm.xlu0 %87, %v86
    %v89 = vpop.permute.xlu0 %88
    %vm90 = vcmp.ge.s32.totalorder %v85, %v89
    %v91 = vld [vmem:[%s2] sm:$0xff]
    %92 = vset.pattern.permute.xlu0 0
    %93 = vperm.xlu0 %92, %v91
    %v94 = vpop.permute.xlu0 %93
    %vm95 = vcmp.lt.s32.totalorder %v85, %v94
    %vm96 = vmand %vm90, %vm95
    %v97 = vsel %vm96, 1, 0
    %v98 = vcvt.s32.f32 %v97
    %v99 = vld [vmem:[#allocation4] sm:$0xff]
    %v100 = vld [vmem:[#allocation2] sm:$0xff]
    %vm101 = vcmask 64512
    %v103 = vsel %vm101, %v98, 0
    %105 = vmatpush.msra.mxu0 0.0
    %106 = vmatpush.msra.mxu0 0.0
    %107 = vmatpush.msra.mxu0 0.0
    %108 = vmatpush.msra.mxu0 0.0
    %109 = vmatpush.msra.mxu0 0.0
    %110 = vmatpush.msra.mxu0 0.0
    %111 = vmatpush.msra.mxu0 0.0
    %112 = vmatpush.msra.mxu0 0.0
    %113 = vmatpush.msra.mxu0 0.0
    %114 = vmatpush.msra.mxu0 0.0
    %115 = vmatpush.msra.mxu0 0.0
    %116 = vmatpush.msra.mxu0 0.0
    %117 = vmatpush.msra.mxu0 0.0
    %118 = vmatpush.msra.mxu0 0.0
    %119 = vmatpush.msra.mxu0 0.0
    %120 = vmatpush.msra.mxu0 %v100
    %121 = vmatmul.f32.gmra.mxu0 %v103
    %v122 = vpop.f32.mrf.mxu0
    %v123 = vadd.f32 0.0, %v122
    %124 = vdwg.mxu0
    %v125 = vadd.f32 %v99, %v123
    %126 = vst [vmem:[#allocation4] sm:$0xff] %v125
    // Predicated region
    $region44: #{tpu_custom_call.1} parent=1 // pred_check
      %p127 = pneg %p45
    $region45: #{tpu_custom_call.1} parent=1 // pred_check_branch
      %129 = sbr.rel (%p127) target = $region47
    $region46: #{tpu_custom_call.1} parent=1 // pred_region
      %v130 = vld [vmem:[%s2] sm:$0xff]
      %v131 = vld [vmem:[%s1] sm:$0xff]
      %v132 = vsub.s32 %v130, %v131
      %v133 = vcvt.s32.f32 %v132
      %v134 = vld [vmem:[#allocation4] sm:$0xff]
      %v135 = vmax.f32 %v133, 1.0
      %137 = vset.pattern.permute.xlu0 0
      %138 = vperm.xlu0 %137, %v135
      %v139 = vpop.permute.xlu0 %138
      %v141 = vrcp.pop %v139
      %v142 = vmul.f32 %v139, %v141
      %v143 = vsub.f32 1.0, %v142
      %v144 = vmul.f32 %v141, %v143
      %v145 = vadd.f32 %v141, %v144
      %vm146 = vweird.f32 %v139
      %vm147 = vweird.f32 %v141
      %vm148 = vmor %vm146, %vm147
      %v149 = vsel %vm148, %v141, %v145
      %v150 = vand.u32 2147483647, %v139
      %vm151 = vcmp.eq.f32.partialorder %v150, 8.507059e+37
      %v152 = vand.u32 %v139, 2147483648
      %v153 = vor.u32 1.1754944e-38, %v152
      %v154 = vsel %vm151, %v153, %v149
      %v155 = vmul.f32 %v134, %v154
      %v156 = vld [vmem:[#allocation7] sm:$0xff]
      %v157 = vld [vmem:[#allocation7 + $0x8] sm:$0xff]
      %v158 = vld [vmem:[#allocation7 + $0x10] sm:$0xff]
      %v159 = vld [vmem:[#allocation7 + $0x18] sm:$0xff]
      %v160 = vld [vmem:[#allocation7 + $0x20] sm:$0xff]
      %v161 = vld [vmem:[#allocation7 + $0x28] sm:$0xff]
      %v162 = vld [vmem:[#allocation7 + $0x30] sm:$0xff]
      %v163 = vld [vmem:[#allocation7 + $0x38] sm:$0xff]
      %v164 = vld [vmem:[#allocation7 + $0x40] sm:$0xff]
      %v165 = vld [vmem:[#allocation7 + $0x48] sm:$0xff]
      %v166 = vld [vmem:[#allocation7 + $0x50] sm:$0xff]
      %v167 = vld [vmem:[#allocation7 + $0x58] sm:$0xff]
      %v168 = vld [vmem:[#allocation7 + $0x60] sm:$0xff]
      %v169 = vld [vmem:[#allocation7 + $0x68] sm:$0xff]
      %v170 = vld [vmem:[#allocation7 + $0x70] sm:$0xff]
      %v171 = vld [vmem:[#allocation7 + $0x78] sm:$0xff]
      %v172 = vld [vmem:[%s5] sm:$0x1]
      %v174 = vperm.slane %v172, 0
      %176 = vmatpush.msra.mxu0 %v171
      %177 = vmatpush.msra.mxu0 %v170
      %178 = vmatpush.msra.mxu0 %v169
      %179 = vmatpush.msra.mxu0 %v168
      %180 = vmatpush.msra.mxu0 %v167
      %181 = vmatpush.msra.mxu0 %v166
      %182 = vmatpush.msra.mxu0 %v165
      %183 = vmatpush.msra.mxu0 %v164
      %184 = vmatpush.msra.mxu0 %v163
      %185 = vmatpush.msra.mxu0 %v162
      %186 = vmatpush.msra.mxu0 %v161
      %187 = vmatpush.msra.mxu0 %v160
      %188 = vmatpush.msra.mxu0 %v159
      %189 = vmatpush.msra.mxu0 %v158
      %190 = vmatpush.msra.mxu0 %v157
      %191 = vmatpush.msra.mxu0 %v156
      %192 = vmatmul.f32.gmra.mxu0 %v155
      %v193 = vpop.f32.mrf.mxu0
      %v194 = vadd.f32 %v174, %v193
      %195 = vdwg.mxu0
      %196 = vst [vmem:[#allocation10] sm:$0xff] %v194
    $region47: #{tpu_custom_call.1} parent=1 // pred_fallthru
      _
    // Predicated region
    $region48: #{tpu_custom_call.1} parent=1 // pred_check
      _
    $region49: #{tpu_custom_call.1} parent=1 // pred_check_branch
      %198 = sbr.rel (0) target = $region51
    $region50: #{tpu_custom_call.1} parent=1 // pred_region
      %200 = vsyncadd [#allocation9], 0
      %s202 = sshll.u32 [#allocation10], 4
      %s203 = int_to_ptr.vmem [resolvable:$true] %s202
      %s204 = sshll.u32 %s6, 4
      %s205 = int_to_ptr.hbm [resolvable:$true] %s204
      %207 = dma.vmem_to_hbm [thread:$0]  %s203, 128, %s205, [#allocation9]
    $region51: #{tpu_custom_call.1} parent=1 // pred_fallthru
      _
    // Predicated region
    $region52: #{tpu_custom_call.1} parent=1 // pred_check
      _
    $region53: #{tpu_custom_call.1} parent=1 // pred_check_branch
      %209 = sbr.rel (0) target = $region55
    $region54: #{tpu_custom_call.1} parent=1 // pred_region
      %211 = dma.done [#allocation9], 128
    $region55: #{tpu_custom_call.1} parent=1 // pred_fallthru
      _
    %212 = vsyncpa [#allocation8], 1
    %213 = vsyncpa [#allocation9], 1
  %214 = vsyncmov [#allocation3]
  %s215 = vpop.sfrf %214
  %p216 = scmp.eq.s32.totalorder %s215, 0
  %p217 = pneg %p216
  %219 = shalt.err (%p217)

</llo_original>
